<compile_context>
chip_gen: v5e
topology: v5e:2x2
jax: 0.10.0
libtpu: 0.0.40
codegen_flags: <defaults>
</compile_context>

<pallas_src>
import functools

import jax
import jax.numpy as jnp
from jax.experimental import pallas as pl
from jax.experimental.pallas import tpu as pltpu

NEG_SLOPE = 0.01  # PyTorch nn.LeakyReLU default

H1 = 128
H2 = 128
H3 = 64
H3_PAD = 128  # lane-dense padding of the 64-wide layer


def _round_up(x, m):
    return ((x + m - 1) // m) * m


def _leaky_relu(x):
    return jnp.where(x > 0, x, NEG_SLOPE * x)


def mlp_kernel(x_ref,
               w1_ref, b1_ref,
               w2_ref, b2_ref,
               w3_ref, b3_ref,
               w4_ref, b4_ref,
               o_ref,
               *, matmul_dtype):
    x = x_ref[...]                                                  # (TB, 1) f32

    # Layer 1: K=1 matmul is an outer product -> VPU broadcast (MXU stays free).
    h = _leaky_relu(x * w1_ref[...] + b1_ref[...])                  # (TB, 128)

    # Layer 2: MXU matmul, f32 accumulation.
    h = jnp.dot(h.astype(matmul_dtype), w2_ref[...].astype(matmul_dtype),
                preferred_element_type=jnp.float32)                 # (TB, 128)
    h = _leaky_relu(h + b2_ref[...])

    # Layer 3: lane-dense (padded to 128 cols, cols 64..127 are exactly zero).
    h = jnp.dot(h.astype(matmul_dtype), w3_ref[...].astype(matmul_dtype),
                preferred_element_type=jnp.float32)                 # (TB, 128)
    h = _leaky_relu(h + b3_ref[...])

    # Layer 4: N=1 matmul -> VPU multiply + XLU lane reduction.
    out = jnp.sum(h * w4_ref[...], axis=-1, keepdims=True) + b4_ref[...]
    o_ref[...] = out.astype(o_ref.dtype)                            # (TB, 1)


def _prepare_params(params):
    """Reshape / lane-pad parameters for the kernel (numerically exact)."""
    w1, b1, w2, b2, w3, b3, w4, b4 = params
    w3p = jnp.zeros((H2, H3_PAD), jnp.float32).at[:, :H3].set(w3)   # (128,128)
    b3p = jnp.zeros((1, H3_PAD), jnp.float32).at[:, :H3].set(b3)    # (1,128)
    w4p = jnp.zeros((1, H3_PAD), jnp.float32).at[:, :H3].set(w4.T)  # (1,128)
    b4p = b4.reshape(1, 1)                                          # (1,1)
    return w1, b1, w2, b2, w3p, b3p, w4p, b4p


def feedforward_nn(x, params, *, tb=2048, matmul_dtype=jnp.float32):
    """x: (B, 1) float32 -> (B, 1) float32.

    tb: batch tile (rows per grid step). 2048 keeps per-iteration VMEM at a
    couple of MiB (safe on v7x's smaller VMEM) while amortizing the ~0.35us
    per-step overhead. For v6e/v7x throughput, pass matmul_dtype=jnp.bfloat16
    (f32 accumulation is kept either way).
    """
    w1, b1, w2, b2, w3p, b3p, w4p, b4p = _prepare_params(params)
    consts = (w1, b1, w2, b2, w3p, b3p, w4p, b4p)

    B = x.shape[0]
    tb = max(8, min(int(tb), _round_up(B, 8)))      # multiple of 8, not > padded B
    b_pad = _round_up(B, tb)
    if b_pad != B:
        x = jnp.pad(x, ((0, b_pad - B), (0, 0)))
    grid = (pl.cdiv(b_pad, tb),)

    weight_bytes = sum(int(a.size) * 4 for a in consts)
    cost = pl.CostEstimate(
        flops=2 * b_pad * (H1 * H2 + H2 * H3_PAD) + 8 * b_pad * H1,
        transcendentals=0,
        bytes_accessed=b_pad * 4 * 2 + weight_bytes,
    )

    def const_spec(a):
        return pl.BlockSpec(a.shape, lambda i: (0, 0))

    out = pl.pallas_call(
        functools.partial(mlp_kernel, matmul_dtype=matmul_dtype),
        out_shape=jax.ShapeDtypeStruct((b_pad, 1), jnp.float32),
        grid=grid,
        in_specs=[pl.BlockSpec((tb, 1), lambda i: (i, 0))]
                 + [const_spec(a) for a in consts],
        out_specs=pl.BlockSpec((tb, 1), lambda i: (i, 0)),
        compiler_params=pltpu.CompilerParams(
            dimension_semantics=("parallel",)),
        cost_estimate=cost,
    )(x, *consts)
    return out[:B]


def init_params(key):
    """Deterministic init matching PyTorch Linear fan-in init.

    Weights kept as (in, out); biases as (1, out).
    """
    sizes = [(1, H1), (H1, H2), (H2, H3), (H3, 1)]
    params = []
    keys = jax.random.split(key, 2 * len(sizes))
    for i, (fan_in, fan_out) in enumerate(sizes):
        bound = 1.0 / jnp.sqrt(fan_in)
        w = jax.random.uniform(keys[2 * i], (fan_in, fan_out),
                               minval=-bound, maxval=bound, dtype=jnp.float32)
        b = jax.random.uniform(keys[2 * i + 1], (1, fan_out),
                               minval=-bound, maxval=bound, dtype=jnp.float32)
        params.extend([w, b])
    return tuple(params)


def reference_forward(x, params):
    w1, b1, w2, b2, w3, b3, w4, b4 = params
    h = jax.nn.leaky_relu(x @ w1 + b1, NEG_SLOPE)
    h = jax.nn.leaky_relu(h @ w2 + b2, NEG_SLOPE)
    h = jax.nn.leaky_relu(h @ w3 + b3, NEG_SLOPE)
    return h @ w4 + b4


if __name__ == "__main__":
    key = jax.random.PRNGKey(0)
    pkey, xkey = jax.random.split(key)
    params = init_params(pkey)

    # Small but multi-tile batch (exercises the grid + last-tile padding).
    B = 37
    x = jax.random.normal(xkey, (B, 1), dtype=jnp.float32)

    out = feedforward_nn(x, params, tb=16)
    out = jax.block_until_ready(out)

    ref = reference_forward(x, params)
    assert out.shape == (B, 1), out.shape
    assert jnp.allclose(out, ref, atol=1e-5, rtol=1e-5), (out, ref)
    print("KERNEL_OK")
</pallas_src>

<mosaic_0001>
module attributes {stable_mosaic.version = 11 : i64} {
  func.func @mlp_kernel(%arg0: i32, %arg1: memref<16x1xf32, #tpu.memory_space<vmem>>, %arg2: memref<1x128xf32, #tpu.memory_space<vmem>>, %arg3: memref<1x128xf32, #tpu.memory_space<vmem>>, %arg4: memref<128x128xf32, #tpu.memory_space<vmem>>, %arg5: memref<1x128xf32, #tpu.memory_space<vmem>>, %arg6: memref<128x128xf32, #tpu.memory_space<vmem>>, %arg7: memref<1x128xf32, #tpu.memory_space<vmem>>, %arg8: memref<1x128xf32, #tpu.memory_space<vmem>>, %arg9: memref<1x1xf32, #tpu.memory_space<vmem>>, %arg10: memref<16x1xf32, #tpu.memory_space<vmem>>) attributes {dimension_semantics = [#tpu.dimension_semantics<parallel>], iteration_bounds = array<i64: 3>, scalar_prefetch = 0 : i64, scratch_operands = 0 : i64, tpu.core_type = #tpu.core_type<tc>, window_params = [{transform_indices = @transform_0, window_bounds = array<i64: 16, 1>}, {pipeline_mode = #tpu.pipeline_mode<synchronous>, transform_indices = @transform_1, window_bounds = array<i64: 1, 128>}, {pipeline_mode = #tpu.pipeline_mode<synchronous>, transform_indices = @transform_2, window_bounds = array<i64: 1, 128>}, {pipeline_mode = #tpu.pipeline_mode<synchronous>, transform_indices = @transform_3, window_bounds = array<i64: 128, 128>}, {pipeline_mode = #tpu.pipeline_mode<synchronous>, transform_indices = @transform_4, window_bounds = array<i64: 1, 128>}, {pipeline_mode = #tpu.pipeline_mode<synchronous>, transform_indices = @transform_5, window_bounds = array<i64: 128, 128>}, {pipeline_mode = #tpu.pipeline_mode<synchronous>, transform_indices = @transform_6, window_bounds = array<i64: 1, 128>}, {pipeline_mode = #tpu.pipeline_mode<synchronous>, transform_indices = @transform_7, window_bounds = array<i64: 1, 128>}, {pipeline_mode = #tpu.pipeline_mode<synchronous>, transform_indices = @transform_8, window_bounds = array<i64: 1, 1>}, {transform_indices = @transform_9, window_bounds = array<i64: 16, 1>}]} {
    %c0 = arith.constant 0 : index
    %c0_0 = arith.constant 0 : index
    %0 = vector.load %arg1[%c0, %c0_0] : memref<16x1xf32, #tpu.memory_space<vmem>>, vector<16x1xf32>
    %c0_1 = arith.constant 0 : index
    %c0_2 = arith.constant 0 : index
    %1 = vector.load %arg2[%c0_1, %c0_2] : memref<1x128xf32, #tpu.memory_space<vmem>>, vector<1x128xf32>
    %2 = vector.broadcast %0 : vector<16x1xf32> to vector<16x128xf32>
    %3 = vector.broadcast %1 : vector<1x128xf32> to vector<16x128xf32>
    %4 = arith.mulf %2, %3 : vector<16x128xf32>
    %c0_3 = arith.constant 0 : index
    %c0_4 = arith.constant 0 : index
    %5 = vector.load %arg3[%c0_3, %c0_4] : memref<1x128xf32, #tpu.memory_space<vmem>>, vector<1x128xf32>
    %6 = vector.broadcast %5 : vector<1x128xf32> to vector<16x128xf32>
    %7 = arith.addf %4, %6 : vector<16x128xf32>
    %cst = arith.constant 0.000000e+00 : f32
    %8 = vector.broadcast %cst : f32 to vector<16x128xf32>
    %9 = arith.cmpf ogt, %7, %8 : vector<16x128xf32>
    %cst_5 = arith.constant 0.00999999977 : f32
    %10 = vector.broadcast %cst_5 : f32 to vector<16x128xf32>
    %11 = arith.mulf %10, %7 : vector<16x128xf32>
    %12 = arith.select %9, %7, %11 : vector<16x128xi1>, vector<16x128xf32>
    %c0_6 = arith.constant 0 : index
    %c0_7 = arith.constant 0 : index
    %13 = vector.load %arg4[%c0_6, %c0_7] : memref<128x128xf32, #tpu.memory_space<vmem>>, vector<128x128xf32>
    %cst_8 = arith.constant dense<0.000000e+00> : vector<16x128xf32>
    %14 = tpu.matmul %12, %13, %cst_8 {dimension_numbers = #tpu.dot_dimension_numbers<[1], [0], [0], [1], [0, 0, 1, 1], [], []>} : vector<16x128xf32>, vector<128x128xf32>, vector<16x128xf32> -> vector<16x128xf32>
    %c0_9 = arith.constant 0 : index
    %c0_10 = arith.constant 0 : index
    %15 = vector.load %arg5[%c0_9, %c0_10] : memref<1x128xf32, #tpu.memory_space<vmem>>, vector<1x128xf32>
    %16 = vector.broadcast %15 : vector<1x128xf32> to vector<16x128xf32>
    %17 = arith.addf %14, %16 : vector<16x128xf32>
    %cst_11 = arith.constant 0.000000e+00 : f32
    %18 = vector.broadcast %cst_11 : f32 to vector<16x128xf32>
    %19 = arith.cmpf ogt, %17, %18 : vector<16x128xf32>
    %cst_12 = arith.constant 0.00999999977 : f32
    %20 = vector.broadcast %cst_12 : f32 to vector<16x128xf32>
    %21 = arith.mulf %20, %17 : vector<16x128xf32>
    %22 = arith.select %19, %17, %21 : vector<16x128xi1>, vector<16x128xf32>
    %c0_13 = arith.constant 0 : index
    %c0_14 = arith.constant 0 : index
    %23 = vector.load %arg6[%c0_13, %c0_14] : memref<128x128xf32, #tpu.memory_space<vmem>>, vector<128x128xf32>
    %cst_15 = arith.constant dense<0.000000e+00> : vector<16x128xf32>
    %24 = tpu.matmul %22, %23, %cst_15 {dimension_numbers = #tpu.dot_dimension_numbers<[1], [0], [0], [1], [0, 0, 1, 1], [], []>} : vector<16x128xf32>, vector<128x128xf32>, vector<16x128xf32> -> vector<16x128xf32>
    %c0_16 = arith.constant 0 : index
    %c0_17 = arith.constant 0 : index
    %25 = vector.load %arg7[%c0_16, %c0_17] : memref<1x128xf32, #tpu.memory_space<vmem>>, vector<1x128xf32>
    %26 = vector.broadcast %25 : vector<1x128xf32> to vector<16x128xf32>
    %27 = arith.addf %24, %26 : vector<16x128xf32>
    %cst_18 = arith.constant 0.000000e+00 : f32
    %28 = vector.broadcast %cst_18 : f32 to vector<16x128xf32>
    %29 = arith.cmpf ogt, %27, %28 : vector<16x128xf32>
    %cst_19 = arith.constant 0.00999999977 : f32
    %30 = vector.broadcast %cst_19 : f32 to vector<16x128xf32>
    %31 = arith.mulf %30, %27 : vector<16x128xf32>
    %32 = arith.select %29, %27, %31 : vector<16x128xi1>, vector<16x128xf32>
    %c0_20 = arith.constant 0 : index
    %c0_21 = arith.constant 0 : index
    %33 = vector.load %arg8[%c0_20, %c0_21] : memref<1x128xf32, #tpu.memory_space<vmem>>, vector<1x128xf32>
    %34 = vector.broadcast %33 : vector<1x128xf32> to vector<16x128xf32>
    %35 = arith.mulf %32, %34 : vector<16x128xf32>
    %cst_22 = arith.constant dense<0.000000e+00> : vector<16xf32>
    %36 = vector.multi_reduction <add>, %35, %cst_22 [1] : vector<16x128xf32> to vector<16xf32>
    %37 = vector.shape_cast %36 : vector<16xf32> to vector<16x1xf32>
    %c0_23 = arith.constant 0 : index
    %c0_24 = arith.constant 0 : index
    %38 = vector.load %arg9[%c0_23, %c0_24] : memref<1x1xf32, #tpu.memory_space<vmem>>, vector<1x1xf32>
    %39 = vector.broadcast %38 : vector<1x1xf32> to vector<16x1xf32>
    %40 = arith.addf %37, %39 : vector<16x1xf32>
    %c0_25 = arith.constant 0 : index
    %c0_26 = arith.constant 0 : index
    %41 = vector.load %arg10[%c0_25, %c0_26] : memref<16x1xf32, #tpu.memory_space<vmem>>, vector<16x1xf32>
    tpu.vector_store %arg10[%c0_25, %c0_26], %40 {strides = array<i32>} : memref<16x1xf32, #tpu.memory_space<vmem>>, vector<16x1xf32>,
    return
  }
  func.func @transform_0(%arg0: i32) -> (i32, i32) {
    %c0_i32 = arith.constant 0 : i32
    %c0_i32_0 = arith.constant 0 : i32
    return %arg0, %c0_i32 : i32, i32
  }
  func.func @transform_1(%arg0: i32) -> (i32, i32) {
    %c0_i32 = arith.constant 0 : i32
    %c0_i32_0 = arith.constant 0 : i32
    %c0_i32_1 = arith.constant 0 : i32
    return %c0_i32, %c0_i32_0 : i32, i32
  }
  func.func @transform_2(%arg0: i32) -> (i32, i32) {
    %c0_i32 = arith.constant 0 : i32
    %c0_i32_0 = arith.constant 0 : i32
    %c0_i32_1 = arith.constant 0 : i32
    return %c0_i32, %c0_i32_0 : i32, i32
  }
  func.func @transform_3(%arg0: i32) -> (i32, i32) {
    %c0_i32 = arith.constant 0 : i32
    %c0_i32_0 = arith.constant 0 : i32
    %c0_i32_1 = arith.constant 0 : i32
    return %c0_i32, %c0_i32_0 : i32, i32
  }
  func.func @transform_4(%arg0: i32) -> (i32, i32) {
    %c0_i32 = arith.constant 0 : i32
    %c0_i32_0 = arith.constant 0 : i32
    %c0_i32_1 = arith.constant 0 : i32
    return %c0_i32, %c0_i32_0 : i32, i32
  }
  func.func @transform_5(%arg0: i32) -> (i32, i32) {
    %c0_i32 = arith.constant 0 : i32
    %c0_i32_0 = arith.constant 0 : i32
    %c0_i32_1 = arith.constant 0 : i32
    return %c0_i32, %c0_i32_0 : i32, i32
  }
  func.func @transform_6(%arg0: i32) -> (i32, i32) {
    %c0_i32 = arith.constant 0 : i32
    %c0_i32_0 = arith.constant 0 : i32
    %c0_i32_1 = arith.constant 0 : i32
    return %c0_i32, %c0_i32_0 : i32, i32
  }
  func.func @transform_7(%arg0: i32) -> (i32, i32) {
    %c0_i32 = arith.constant 0 : i32
    %c0_i32_0 = arith.constant 0 : i32
    %c0_i32_1 = arith.constant 0 : i32
    return %c0_i32, %c0_i32_0 : i32, i32
  }
  func.func @transform_8(%arg0: i32) -> (i32, i32) {
    %c0_i32 = arith.constant 0 : i32
    %c0_i32_0 = arith.constant 0 : i32
    %c0_i32_1 = arith.constant 0 : i32
    return %c0_i32, %c0_i32_0 : i32, i32
  }
  func.func @transform_9(%arg0: i32) -> (i32, i32) {
    %c0_i32 = arith.constant 0 : i32
    %c0_i32_0 = arith.constant 0 : i32
    return %arg0, %c0_i32 : i32, i32
  }
}

</mosaic_0001>

<llo_original>
// kernel: tpu_custom_call.1
$region0: #{tpu_custom_call.1}
  #allocation0 [shape = 'u32[]', space=smem, size = 0x4, offset = 0x4, fixed_abs, tag = 'smem constant byte address 0x4 - core index']
  #allocation1 [shape = 'u32[72,128]{1,0:T(1,128)}', space=vmem, size = 0x9000, scoped, tag = 'internal scratch']
  #allocation2 [shape = 'f32[1,1]{1,0:T(1,128)S(1)}', space=vmem, size = 0x200, scoped, tag = 'scoped memory for tpu_custom_call.1']
  %s0 = inlined_call_operand.vmem [shape: f32[48,1], index: 0, kind: input, shape index: {}]
  %s1 = inlined_call_operand.vmem [shape: f32[1,128], index: 1, kind: input, shape index: {}]
  %s2 = inlined_call_operand.vmem [shape: f32[1,128], index: 2, kind: input, shape index: {}]
  %s3 = inlined_call_operand.hbm [shape: f32[128,128], index: 3, kind: input, shape index: {}]
  %s4 = inlined_call_operand.vmem [shape: f32[1,128], index: 4, kind: input, shape index: {}]
  %s5 = inlined_call_operand.hbm [shape: f32[128,128], index: 5, kind: input, shape index: {}]
  %s6 = inlined_call_operand.vmem [shape: f32[1,128], index: 6, kind: input, shape index: {}]
  %s7 = inlined_call_operand.vmem [shape: f32[1,128], index: 7, kind: input, shape index: {}]
  %s8 = inlined_call_operand.<no memory space> [shape: f32[1,1], index: 8, kind: input, shape index: {}]
  %s9 = inlined_call_operand.vmem [shape: f32[48,1], index: 9, kind: output, shape index: {}]
  %s10 = sld [smem:[#allocation0]]
  $region77: #{tpu_custom_call.1} parent=0
    _
  %s12 = ssub.s32 1, %s10
  %s13 = scalar_select 0, %s12, %s10
  %v14 = vstv %s8
  %15 = vst [vmem:[#allocation2] sm:$0x1] %v14
  $region1: #{tpu_custom_call.1} parent=0
    #allocation3 [shape = 'u8[65536]{0}', space=vmem, size = 0x10000, scoped, tag = 'input window, operand 3, single buffered']
    #allocation4 [shape = 's32[2]{0}', space=sflag, size = 0x8, scoped, tag = 'scoped memory for tpu_custom_call.1']
    #allocation5 [shape = 'u8[65536]{0}', space=vmem, size = 0x10000, scoped, tag = 'input window, operand 5, single buffered']
    #allocation6 [shape = 's32[1]{0}', space=sflag, size = 0x4, scoped, tag = 'scoped memory for tpu_custom_call.1']
    %16 = vsyncpa [#allocation4], 0
    %17 = vsyncpa [#allocation6], 0
    loop: start=0, step=1, limit=5
    $region2: #{tpu_custom_call.1} parent=1 // loop_pre_header
      _
    $region3: #{tpu_custom_call.1} parent=1 // loop_header
      %s19 = sphi 0, %s23
      %p20 = scmp.ge.s32.totalorder %s19, 5
      %s29 = sphi 0, %s31
      %s32 = sphi 0, %s29
      %s33 = sphi 0, %s32
      %s49 = sphi 0, %s33
      %s53 = sphi 0, %s53
      %s55 = sphi 0, %s53
      %s56 = sphi 0, %s55
      %s70 = sphi 0, %s56
      %s74 = sphi 0, %s74
      %s76 = sphi 0, %s74
      %s77 = sphi 0, %s76
      %s91 = sphi 0, %s77
      %s95 = sphi 0, %s95
      %s97 = sphi 0, %s95
      %s98 = sphi 0, %s97
      %s112 = sphi 0, %s98
      %s116 = sphi 0, %s116
      %s118 = sphi 0, %s116
      %s119 = sphi 0, %s118
      %s133 = sphi 0, %s119
      %s137 = sphi 0, %s137
      %s139 = sphi 0, %s137
      %s140 = sphi 0, %s139
      %s154 = sphi 0, %s140
      %s158 = sphi 0, %s158
      %s160 = sphi 0, %s158
      %s161 = sphi 0, %s160
      %s175 = sphi 0, %s161
      %s179 = sphi 0, %s179
      %s181 = sphi 0, %s179
      %s182 = sphi 0, %s181
      %s196 = sphi 0, %s182
      %s200 = sphi 0, %s200
      %s202 = sphi 0, %s200
      %s203 = sphi 0, %s202
      %s217 = sphi 0, %s203
      %s223 = sphi 0, %s225
      %s226 = sphi 0, %s223
      %s227 = sphi 0, %s226
      %s243 = sphi 0, %s227
    $region4: #{tpu_custom_call.1} parent=1 // loop_header_branch
      %22 = sbr.rel (%p20) target = $region8
    $region5: #{tpu_custom_call.1} parent=1 // loop_body
      %s24 = ssub.s32 %s19, 1
      %s25 = ssub.s32 %s19, 2
      %s26 = sadd.s32 %s19, 1
      %s27 = ssub.s32 %s19, %s26
      %p28 = scmp.eq.s32.totalorder %s27, 0
      %s30 = sadd.s32 %s29, 1
      %s31 = scalar_select %p28, %s29, %s30
      %p34 = pneg %p28
      %p35 = scmp.eq.s32.totalorder %s19, 2
      %p36 = por %p34, %p35
      %p37 = scmp.ne.s32.totalorder %s29, %s32
      %p38 = scmp.eq.s32.totalorder %s19, 0
      %p39 = por %p37, %p38
      %p40 = scmp.ne.s32.totalorder %s29, %s32
      %p41 = scmp.eq.s32.totalorder %s24, 2
      %p42 = por %p40, %p41
      %p43 = scmp.ne.s32.totalorder %s32, %s33
      %p44 = scmp.eq.s32.totalorder %s24, 0
      %p45 = por %p43, %p44
      %p46 = scmp.ne.s32.totalorder %s32, %s33
      %p47 = scmp.eq.s32.totalorder %s25, 2
      %p48 = por %p46, %p47
      %p50 = scmp.ne.s32.totalorder %s33, %s49
      %p51 = scmp.eq.s32.totalorder %s25, 0
      %p52 = por %p50, %p51
      %s54 = sadd.s32 %s53, 1
      %p57 = scmp.eq.s32.totalorder %s19, 2
      %p58 = scmp.ne.s32.totalorder %s53, %s55
      %p59 = scmp.eq.s32.totalorder %s19, 0
      %p60 = por %p58, %p59
      %p61 = scmp.ne.s32.totalorder %s53, %s55
      %p62 = scmp.eq.s32.totalorder %s24, 2
      %p63 = por %p61, %p62
      %p64 = scmp.ne.s32.totalorder %s55, %s56
      %p65 = scmp.eq.s32.totalorder %s24, 0
      %p66 = por %p64, %p65
      %p67 = scmp.ne.s32.totalorder %s55, %s56
      %p68 = scmp.eq.s32.totalorder %s25, 2
      %p69 = por %p67, %p68
      %p71 = scmp.ne.s32.totalorder %s56, %s70
      %p72 = scmp.eq.s32.totalorder %s25, 0
      %p73 = por %p71, %p72
      %s75 = sadd.s32 %s74, 1
      %p78 = scmp.eq.s32.totalorder %s19, 2
      %p79 = scmp.ne.s32.totalorder %s74, %s76
      %p80 = scmp.eq.s32.totalorder %s19, 0
      %p81 = por %p79, %p80
      %p82 = scmp.ne.s32.totalorder %s74, %s76
      %p83 = scmp.eq.s32.totalorder %s24, 2
      %p84 = por %p82, %p83
      %p85 = scmp.ne.s32.totalorder %s76, %s77
      %p86 = scmp.eq.s32.totalorder %s24, 0
      %p87 = por %p85, %p86
      %p88 = scmp.ne.s32.totalorder %s76, %s77
      %p89 = scmp.eq.s32.totalorder %s25, 2
      %p90 = por %p88, %p89
      %p92 = scmp.ne.s32.totalorder %s77, %s91
      %p93 = scmp.eq.s32.totalorder %s25, 0
      %p94 = por %p92, %p93
      %s96 = sadd.s32 %s95, 1
      %p99 = scmp.eq.s32.totalorder %s19, 2
      %p100 = scmp.ne.s32.totalorder %s95, %s97
      %p101 = scmp.eq.s32.totalorder %s19, 0
      %p102 = por %p100, %p101
      %p103 = scmp.ne.s32.totalorder %s95, %s97
      %p104 = scmp.eq.s32.totalorder %s24, 2
      %p105 = por %p103, %p104
      %p106 = scmp.ne.s32.totalorder %s97, %s98
      %p107 = scmp.eq.s32.totalorder %s24, 0
      %p108 = por %p106, %p107
      %p109 = scmp.ne.s32.totalorder %s97, %s98
      %p110 = scmp.eq.s32.totalorder %s25, 2
      %p111 = por %p109, %p110
      %p113 = scmp.ne.s32.totalorder %s98, %s112
      %p114 = scmp.eq.s32.totalorder %s25, 0
      %p115 = por %p113, %p114
      %s117 = sadd.s32 %s116, 1
      %p120 = scmp.eq.s32.totalorder %s19, 2
      %p121 = scmp.ne.s32.totalorder %s116, %s118
      %p122 = scmp.eq.s32.totalorder %s19, 0
      %p123 = por %p121, %p122
      %p124 = scmp.ne.s32.totalorder %s116, %s118
      %p125 = scmp.eq.s32.totalorder %s24, 2
      %p126 = por %p124, %p125
      %p127 = scmp.ne.s32.totalorder %s118, %s119
      %p128 = scmp.eq.s32.totalorder %s24, 0
      %p129 = por %p127, %p128
      %p130 = scmp.ne.s32.totalorder %s118, %s119
      %p131 = scmp.eq.s32.totalorder %s25, 2
      %p132 = por %p130, %p131
      %p134 = scmp.ne.s32.totalorder %s119, %s133
      %p135 = scmp.eq.s32.totalorder %s25, 0
      %p136 = por %p134, %p135
      %s138 = sadd.s32 %s137, 1
      %p141 = scmp.eq.s32.totalorder %s19, 2
      %p142 = scmp.ne.s32.totalorder %s137, %s139
      %p143 = scmp.eq.s32.totalorder %s19, 0
      %p144 = por %p142, %p143
      %p145 = scmp.ne.s32.totalorder %s137, %s139
      %p146 = scmp.eq.s32.totalorder %s24, 2
      %p147 = por %p145, %p146
      %p148 = scmp.ne.s32.totalorder %s139, %s140
      %p149 = scmp.eq.s32.totalorder %s24, 0
      %p150 = por %p148, %p149
      %p151 = scmp.ne.s32.totalorder %s139, %s140
      %p152 = scmp.eq.s32.totalorder %s25, 2
      %p153 = por %p151, %p152
      %p155 = scmp.ne.s32.totalorder %s140, %s154
      %p156 = scmp.eq.s32.totalorder %s25, 0
      %p157 = por %p155, %p156
      %s159 = sadd.s32 %s158, 1
      %p162 = scmp.eq.s32.totalorder %s19, 2
      %p163 = scmp.ne.s32.totalorder %s158, %s160
      %p164 = scmp.eq.s32.totalorder %s19, 0
      %p165 = por %p163, %p164
      %p166 = scmp.ne.s32.totalorder %s158, %s160
      %p167 = scmp.eq.s32.totalorder %s24, 2
      %p168 = por %p166, %p167
      %p169 = scmp.ne.s32.totalorder %s160, %s161
      %p170 = scmp.eq.s32.totalorder %s24, 0
      %p171 = por %p169, %p170
      %p172 = scmp.ne.s32.totalorder %s160, %s161
      %p173 = scmp.eq.s32.totalorder %s25, 2
      %p174 = por %p172, %p173
      %p176 = scmp.ne.s32.totalorder %s161, %s175
      %p177 = scmp.eq.s32.totalorder %s25, 0
      %p178 = por %p176, %p177
      %s180 = sadd.s32 %s179, 1
      %p183 = scmp.eq.s32.totalorder %s19, 2
      %p184 = scmp.ne.s32.totalorder %s179, %s181
      %p185 = scmp.eq.s32.totalorder %s19, 0
      %p186 = por %p184, %p185
      %p187 = scmp.ne.s32.totalorder %s179, %s181
      %p188 = scmp.eq.s32.totalorder %s24, 2
      %p189 = por %p187, %p188
      %p190 = scmp.ne.s32.totalorder %s181, %s182
      %p191 = scmp.eq.s32.totalorder %s24, 0
      %p192 = por %p190, %p191
      %p193 = scmp.ne.s32.totalorder %s181, %s182
      %p194 = scmp.eq.s32.totalorder %s25, 2
      %p195 = por %p193, %p194
      %p197 = scmp.ne.s32.totalorder %s182, %s196
      %p198 = scmp.eq.s32.totalorder %s25, 0
      %p199 = por %p197, %p198
      %s201 = sadd.s32 %s200, 1
      %p204 = scmp.eq.s32.totalorder %s19, 2
      %p205 = scmp.ne.s32.totalorder %s200, %s202
      %p206 = scmp.eq.s32.totalorder %s19, 0
      %p207 = por %p205, %p206
      %p208 = scmp.ne.s32.totalorder %s200, %s202
      %p209 = scmp.eq.s32.totalorder %s24, 2
      %p210 = por %p208, %p209
      %p211 = scmp.ne.s32.totalorder %s202, %s203
      %p212 = scmp.eq.s32.totalorder %s24, 0
      %p213 = por %p211, %p212
      %p214 = scmp.ne.s32.totalorder %s202, %s203
      %p215 = scmp.eq.s32.totalorder %s25, 2
      %p216 = por %p214, %p215
      %p218 = scmp.ne.s32.totalorder %s203, %s217
      %p219 = scmp.eq.s32.totalorder %s25, 0
      %p220 = por %p218, %p219
      %s221 = ssub.s32 %s19, %s26
      %p222 = scmp.eq.s32.totalorder %s221, 0
      %s224 = sadd.s32 %s223, 1
      %s225 = scalar_select %p222, %s223, %s224
      %p228 = pneg %p222
      %p229 = scmp.eq.s32.totalorder %s19, 2
      %p230 = por %p228, %p229
      %p231 = scmp.ne.s32.totalorder %s223, %s226
      %p232 = scmp.eq.s32.totalorder %s19, 0
      %p233 = por %p231, %p232
      %p234 = scmp.ne.s32.totalorder %s223, %s226
      %p235 = scmp.eq.s32.totalorder %s24, 2
      %p236 = por %p234, %p235
      %p237 = scmp.ne.s32.totalorder %s226, %s227
      %p238 = scmp.eq.s32.totalorder %s24, 0
      %p239 = por %p237, %p238
      %p240 = scmp.ne.s32.totalorder %s226, %s227
      %p241 = scmp.eq.s32.totalorder %s25, 2
      %p242 = por %p240, %p241
      %p244 = scmp.ne.s32.totalorder %s227, %s243
      %p245 = scmp.eq.s32.totalorder %s25, 0
      %p246 = por %p244, %p245
      %p247 = scmp.le.s32.totalorder 1, %s19
      %p248 = scmp.lt.s32.totalorder %s19, 4
      %p249 = pnand %p247, %p248
      %p250 = pneg %p249
      // Predicated region
      $region9: #{tpu_custom_call.1} parent=5 // pred_check
        _
      $region10: #{tpu_custom_call.1} parent=5 // pred_check_branch
        %252 = sbr.rel (%p249) target = $region12
      $region11: #{tpu_custom_call.1} parent=5 // pred_region
        %s253 = ssub.s32 %s19, 1
        // Predicated region
        $region13: #{tpu_custom_call.1} parent=11 // pred_check
          %p254 = pneg %p66
        $region14: #{tpu_custom_call.1} parent=11 // pred_check_branch
          %256 = sbr.rel (%p254) target = $region16
        $region15: #{tpu_custom_call.1} parent=11 // pred_region
          _
        $region16: #{tpu_custom_call.1} parent=11 // pred_fallthru
          _
        // Predicated region
        $region17: #{tpu_custom_call.1} parent=11 // pred_check
          %p257 = pneg %p87
        $region18: #{tpu_custom_call.1} parent=11 // pred_check_branch
          %259 = sbr.rel (%p257) target = $region20
        $region19: #{tpu_custom_call.1} parent=11 // pred_region
          _
        $region20: #{tpu_custom_call.1} parent=11 // pred_fallthru
          _
        // Predicated region
        $region21: #{tpu_custom_call.1} parent=11 // pred_check
          %p260 = pneg %p108
        $region22: #{tpu_custom_call.1} parent=11 // pred_check_branch
          %262 = sbr.rel (%p260) target = $region24
        $region23: #{tpu_custom_call.1} parent=11 // pred_region
          %264 = vsyncadd [#allocation4], 0
          %s265 = sshll.u32 %s3, 4
          %s266 = int_to_ptr.hbm [resolvable:$true] %s265
          %s267 = sshll.u32 [#allocation3], 4
          %s268 = int_to_ptr.vmem [resolvable:$true] %s267
          %273 = dma.hbm_to_vmem [thread:$0]  %s266, 2048, %s268, [#allocation4], 128, 128, 8
        $region24: #{tpu_custom_call.1} parent=11 // pred_fallthru
          _
        // Predicated region
        $region25: #{tpu_custom_call.1} parent=11 // pred_check
          %p274 = pneg %p129
        $region26: #{tpu_custom_call.1} parent=11 // pred_check_branch
          %276 = sbr.rel (%p274) target = $region28
        $region27: #{tpu_custom_call.1} parent=11 // pred_region
          _
        $region28: #{tpu_custom_call.1} parent=11 // pred_fallthru
          _
        // Predicated region
        $region29: #{tpu_custom_call.1} parent=11 // pred_check
          %p277 = pneg %p150
        $region30: #{tpu_custom_call.1} parent=11 // pred_check_branch
          %279 = sbr.rel (%p277) target = $region32
        $region31: #{tpu_custom_call.1} parent=11 // pred_region
          %281 = vsyncadd [#allocation6], 0
          %s282 = sshll.u32 %s5, 4
          %s283 = int_to_ptr.hbm [resolvable:$true] %s282
          %s284 = sshll.u32 [#allocation5], 4
          %s285 = int_to_ptr.vmem [resolvable:$true] %s284
          %290 = dma.hbm_to_vmem [thread:$0]  %s283, 2048, %s285, [#allocation6], 128, 128, 8
        $region32: #{tpu_custom_call.1} parent=11 // pred_fallthru
          _
        // Predicated region
        $region33: #{tpu_custom_call.1} parent=11 // pred_check
          %p291 = pneg %p171
        $region34: #{tpu_custom_call.1} parent=11 // pred_check_branch
          %293 = sbr.rel (%p291) target = $region36
        $region35: #{tpu_custom_call.1} parent=11 // pred_region
          _
        $region36: #{tpu_custom_call.1} parent=11 // pred_fallthru
          _
        // Predicated region
        $region37: #{tpu_custom_call.1} parent=11 // pred_check
          %p294 = pneg %p192
        $region38: #{tpu_custom_call.1} parent=11 // pred_check_branch
          %296 = sbr.rel (%p294) target = $region40
        $region39: #{tpu_custom_call.1} parent=11 // pred_region
          _
        $region40: #{tpu_custom_call.1} parent=11 // pred_fallthru
          _
        // Predicated region
        $region41: #{tpu_custom_call.1} parent=11 // pred_check
          %p297 = pneg %p213
        $region42: #{tpu_custom_call.1} parent=11 // pred_check_branch
          %299 = sbr.rel (%p297) target = $region44
        $region43: #{tpu_custom_call.1} parent=11 // pred_region
          _
        $region44: #{tpu_custom_call.1} parent=11 // pred_fallthru
          _
      $region12: #{tpu_custom_call.1} parent=5 // pred_fallthru
        _
      %p300 = scmp.lt.s32.totalorder %s19, 3
      // Predicated region
      $region45: #{tpu_custom_call.1} parent=5 // pred_check
        %p301 = pneg %p300
      $region46: #{tpu_custom_call.1} parent=5 // pred_check_branch
        %303 = sbr.rel (%p301) target = $region48
      $region47: #{tpu_custom_call.1} parent=5 // pred_region
        // Predicated region
        $region49: #{tpu_custom_call.1} parent=47 // pred_check
          %p304 = pneg %p39
        $region50: #{tpu_custom_call.1} parent=47 // pred_check_branch
          %306 = sbr.rel (%p304) target = $region52
        $region51: #{tpu_custom_call.1} parent=47 // pred_region
          %s307 = smul.u32 2, %s19
          %p308 = scmp.lt.s32.totalorder %s307, 5
          %s309 = scalar_select %p308, %s307, 5
          %s310 = smul.addr %s309, 8
          %s311 = scalar_lea.vmem %s0, %s310
          %s312 = smul.u32 2, %s19
        $region52: #{tpu_custom_call.1} parent=47 // pred_fallthru
          _
      $region48: #{tpu_custom_call.1} parent=5 // pred_fallthru
        _
      %p313 = scmp.le.s32.totalorder 1, %s19
      %p314 = scmp.lt.s32.totalorder %s19, 4
      %p315 = pnand %p313, %p314
      %p316 = pneg %p315
      // Predicated region
      $region53: #{tpu_custom_call.1} parent=5 // pred_check
        _
      $region54: #{tpu_custom_call.1} parent=5 // pred_check_branch
        %318 = sbr.rel (%p315) target = $region56
      $region55: #{tpu_custom_call.1} parent=5 // pred_region
        %s319 = ssub.s32 %s19, 1
        // Predicated region
        $region57: #{tpu_custom_call.1} parent=55 // pred_check
          %p320 = pneg %p108
        $region58: #{tpu_custom_call.1} parent=55 // pred_check_branch
          %322 = sbr.rel (%p320) target = $region60
        $region59: #{tpu_custom_call.1} parent=55 // pred_region
          %324 = dma.done [#allocation4], 2048
        $region60: #{tpu_custom_call.1} parent=55 // pred_fallthru
          _
        // Predicated region
        $region61: #{tpu_custom_call.1} parent=55 // pred_check
          %p325 = pneg %p150
        $region62: #{tpu_custom_call.1} parent=55 // pred_check_branch
          %327 = sbr.rel (%p325) target = $region64
        $region63: #{tpu_custom_call.1} parent=55 // pred_region
          %329 = dma.done [#allocation6], 2048
        $region64: #{tpu_custom_call.1} parent=55 // pred_fallthru
          _
        %s330 = smul.u32 2, %s24
        %p331 = scmp.lt.s32.totalorder %s330, 5
        %s332 = scalar_select %p331, %s330, 5
        %s333 = smul.addr %s332, 8
        %s334 = scalar_lea.vmem %s0, %s333
        %p335 = pneg %p45
        %p336 = pneg %p42
        %p337 = pneg %p66
        %p338 = pneg %p63
        %p339 = pneg %p87
        %p340 = pneg %p84
        %p341 = pneg %p108
        %p342 = pneg %p105
        %p343 = pneg %p129
        %p344 = pneg %p126
        %p345 = pneg %p150
        %p346 = pneg %p147
        %p347 = pneg %p171
        %p348 = pneg %p168
        %p349 = pneg %p192
        %p350 = pneg %p189
        %p351 = pneg %p213
        %p352 = pneg %p210
        %p353 = pneg %p239
        %p354 = pneg %p236
        %s355 = smul.u32 2, %s24
        %p356 = scmp.lt.s32.totalorder %s355, 5
        %s357 = scalar_select %p356, %s355, 5
        %s358 = smul.addr %s357, 8
        %s359 = scalar_lea.vmem %s9, %s358
        %s360 = smul.u32 2, %s24
        %p361 = scmp.lt.s32.totalorder %s360, 5
        %s362 = scalar_select %p361, %s360, 5
        %s363 = smul.addr %s362, 8
        %s364 = scalar_lea.vmem %s0, %s363
        %s365 = smul.u32 2, %s24
        %s366 = smul.u32 2, %s24
        %p367 = scmp.lt.s32.totalorder %s366, 5
        %s368 = scalar_select %p367, %s366, 5
        %s369 = smul.addr %s368, 8
        %s370 = scalar_lea.vmem %s9, %s369
        %s371 = smul.u32 2, %s24
        %v372 = vld [vmem:[%s364] sm:$0xff]
        %v373 = vld [vmem:[%s364 + $0x8] sm:$0xff]
        %v374 = vld [vmem:[%s1] sm:$0x1]
        %376 = vset.pattern.permute.xlu0 0
        %377 = vperm.xlu0 %376, %v372
        %v378 = vpop.permute.xlu0 %377
        %381 = vset.pattern.permute.xlu0 0
        %382 = vperm.xlu0 %381, %v373
        %v383 = vpop.permute.xlu0 %382
        %v386 = vperm.slane %v374, 0
        %v388 = vmul.f32 %v378, %v386
        %v389 = vmul.f32 %v383, %v386
        %v390 = vld [vmem:[%s2] sm:$0x1]
        %v392 = vperm.slane %v390, 0
        %v394 = vadd.f32 %v388, %v392
        %v395 = vadd.f32 %v389, %v392
        %vm396 = vcmp.gt.f32.partialorder %v394, 0.0
        %vm397 = vcmp.gt.f32.partialorder %v395, 0.0
        %v398 = vmul.f32 %v394, 0.01
        %v399 = vmul.f32 %v395, 0.01
        %v400 = vsel %vm396, %v394, %v398
        %v401 = vsel %vm397, %v395, %v399
        %v402 = vld [vmem:[#allocation3] sm:$0xff]
        %v403 = vld [vmem:[#allocation3 + $0x8] sm:$0xff]
        %v404 = vld [vmem:[#allocation3 + $0x10] sm:$0xff]
        %v405 = vld [vmem:[#allocation3 + $0x18] sm:$0xff]
        %v406 = vld [vmem:[#allocation3 + $0x20] sm:$0xff]
        %v407 = vld [vmem:[#allocation3 + $0x28] sm:$0xff]
        %v408 = vld [vmem:[#allocation3 + $0x30] sm:$0xff]
        %v409 = vld [vmem:[#allocation3 + $0x38] sm:$0xff]
        %v410 = vld [vmem:[#allocation3 + $0x40] sm:$0xff]
        %v411 = vld [vmem:[#allocation3 + $0x48] sm:$0xff]
        %v412 = vld [vmem:[#allocation3 + $0x50] sm:$0xff]
        %v413 = vld [vmem:[#allocation3 + $0x58] sm:$0xff]
        %v414 = vld [vmem:[#allocation3 + $0x60] sm:$0xff]
        %v415 = vld [vmem:[#allocation3 + $0x68] sm:$0xff]
        %v416 = vld [vmem:[#allocation3 + $0x70] sm:$0xff]
        %v417 = vld [vmem:[#allocation3 + $0x78] sm:$0xff]
        %v418 = vld [vmem:[%s4] sm:$0x1]
        %v420 = vperm.slane %v418, 0
        %422 = vmatpush.msra.mxu0 %v417
        %423 = vmatpush.msra.mxu0 %v416
        %424 = vmatpush.msra.mxu0 %v415
        %425 = vmatpush.msra.mxu0 %v414
        %426 = vmatpush.msra.mxu0 %v413
        %427 = vmatpush.msra.mxu0 %v412
        %428 = vmatpush.msra.mxu0 %v411
        %429 = vmatpush.msra.mxu0 %v410
        %430 = vmatpush.msra.mxu0 %v409
        %431 = vmatpush.msra.mxu0 %v408
        %432 = vmatpush.msra.mxu0 %v407
        %433 = vmatpush.msra.mxu0 %v406
        %434 = vmatpush.msra.mxu0 %v405
        %435 = vmatpush.msra.mxu0 %v404
        %436 = vmatpush.msra.mxu0 %v403
        %437 = vmatpush.msra.mxu0 %v402
        %438 = vmatmul.f32.gmra.mxu0 %v400
        %v439 = vpop.f32.mrf.mxu0
        %v440 = vadd.f32 %v420, %v439
        %441 = vmatmul.f32.gmra.mxu0 %v401
        %v442 = vpop.f32.mrf.mxu0
        %v443 = vadd.f32 %v420, %v442
        %444 = vdwg.mxu0
        %vm445 = vcmp.gt.f32.partialorder %v440, 0.0
        %vm446 = vcmp.gt.f32.partialorder %v443, 0.0
        %v447 = vmul.f32 %v440, 0.01
        %v448 = vmul.f32 %v443, 0.01
        %v449 = vsel %vm445, %v440, %v447
        %v450 = vsel %vm446, %v443, %v448
        %v451 = vld [vmem:[#allocation5] sm:$0xff]
        %v452 = vld [vmem:[#allocation5 + $0x8] sm:$0xff]
        %v453 = vld [vmem:[#allocation5 + $0x10] sm:$0xff]
        %v454 = vld [vmem:[#allocation5 + $0x18] sm:$0xff]
        %v455 = vld [vmem:[#allocation5 + $0x20] sm:$0xff]
        %v456 = vld [vmem:[#allocation5 + $0x28] sm:$0xff]
        %v457 = vld [vmem:[#allocation5 + $0x30] sm:$0xff]
        %v458 = vld [vmem:[#allocation5 + $0x38] sm:$0xff]
        %v459 = vld [vmem:[#allocation5 + $0x40] sm:$0xff]
        %v460 = vld [vmem:[#allocation5 + $0x48] sm:$0xff]
        %v461 = vld [vmem:[#allocation5 + $0x50] sm:$0xff]
        %v462 = vld [vmem:[#allocation5 + $0x58] sm:$0xff]
        %v463 = vld [vmem:[#allocation5 + $0x60] sm:$0xff]
        %v464 = vld [vmem:[#allocation5 + $0x68] sm:$0xff]
        %v465 = vld [vmem:[#allocation5 + $0x70] sm:$0xff]
        %v466 = vld [vmem:[#allocation5 + $0x78] sm:$0xff]
        %v467 = vld [vmem:[%s6] sm:$0x1]
        %v469 = vperm.slane %v467, 0
        %471 = vmatpush.msra.mxu0 %v466
        %472 = vmatpush.msra.mxu0 %v465
        %473 = vmatpush.msra.mxu0 %v464
        %474 = vmatpush.msra.mxu0 %v463
        %475 = vmatpush.msra.mxu0 %v462
        %476 = vmatpush.msra.mxu0 %v461
        %477 = vmatpush.msra.mxu0 %v460
        %478 = vmatpush.msra.mxu0 %v459
        %479 = vmatpush.msra.mxu0 %v458
        %480 = vmatpush.msra.mxu0 %v457
        %481 = vmatpush.msra.mxu0 %v456
        %482 = vmatpush.msra.mxu0 %v455
        %483 = vmatpush.msra.mxu0 %v454
        %484 = vmatpush.msra.mxu0 %v453
        %485 = vmatpush.msra.mxu0 %v452
        %486 = vmatpush.msra.mxu0 %v451
        %487 = vmatmul.f32.gmra.mxu0 %v449
        %v488 = vpop.f32.mrf.mxu0
        %v489 = vadd.f32 %v469, %v488
        %490 = vmatmul.f32.gmra.mxu0 %v450
        %v491 = vpop.f32.mrf.mxu0
        %v492 = vadd.f32 %v469, %v491
        %493 = vdwg.mxu0
        %vm494 = vcmp.gt.f32.partialorder %v489, 0.0
        %vm495 = vcmp.gt.f32.partialorder %v492, 0.0
        %v496 = vmul.f32 %v489, 0.01
        %v497 = vmul.f32 %v492, 0.01
        %v498 = vsel %vm494, %v489, %v496
        %v499 = vsel %vm495, %v492, %v497
        %v500 = vld [vmem:[%s7] sm:$0x1]
        %v502 = vperm.slane %v500, 0
        %v504 = vmul.f32 %v498, %v502
        %v505 = vmul.f32 %v499, %v502
        %506 = vadd.xlane.f32.xlu0 %v504
        %v507 = vpop.xlane.xlu0 %506
        %508 = vadd.xlane.f32.xlu0 %v505
        %v509 = vpop.xlane.xlu0 %508
        %v510 = vld [vmem:[#allocation2] sm:$0x1]
        %v512 = vperm.slane %v510, 0
        %v514 = vadd.f32 %v507, %v512
        %v515 = vadd.f32 %v509, %v512
        %vm516 = vcmask 7168
        %517 = vst.msk [vmem:[%s370] sm:$0xff] %vm516, %v514
        %518 = vst.msk [vmem:[%s370 + $0x8] sm:$0xff] %vm516, %v515
        %s519 = smul.u32 2, %s24
        %p520 = scmp.lt.s32.totalorder %s519, 5
        %s521 = scalar_select %p520, %s519, 5
        %s522 = smul.addr %s521, 8
        %s523 = scalar_lea.vmem %s9, %s522
        // Predicated region
        $region65: #{tpu_custom_call.1} parent=55 // pred_check
          %p524 = pneg %p236
        $region66: #{tpu_custom_call.1} parent=55 // pred_check_branch
          %526 = sbr.rel (%p524) target = $region68
        $region67: #{tpu_custom_call.1} parent=55 // pred_region
          %s527 = smul.u32 2, %s24
        $region68: #{tpu_custom_call.1} parent=55 // pred_fallthru
          _
      $region56: #{tpu_custom_call.1} parent=5 // pred_fallthru
        _
      %p528 = scmp.le.s32.totalorder 2, %s19
      // Predicated region
      $region69: #{tpu_custom_call.1} parent=5 // pred_check
        %p529 = pneg %p528
      $region70: #{tpu_custom_call.1} parent=5 // pred_check_branch
        %531 = sbr.rel (%p529) target = $region72
      $region71: #{tpu_custom_call.1} parent=5 // pred_region
        %s532 = ssub.s32 %s19, 2
        // Predicated region
        $region73: #{tpu_custom_call.1} parent=71 // pred_check
          %p533 = pneg %p242
        $region74: #{tpu_custom_call.1} parent=71 // pred_check_branch
          %535 = sbr.rel (%p533) target = $region76
        $region75: #{tpu_custom_call.1} parent=71 // pred_region
          %s536 = smul.u32 2, %s25
          %p537 = scmp.lt.s32.totalorder %s536, 5
          %s538 = scalar_select %p537, %s536, 5
          %s539 = smul.addr %s538, 8
          %s540 = scalar_lea.vmem %s9, %s539
        $region76: #{tpu_custom_call.1} parent=71 // pred_fallthru
          _
      $region72: #{tpu_custom_call.1} parent=5 // pred_fallthru
        _
    $region6: #{tpu_custom_call.1} parent=1 // loop_footer
      %s23 = sadd.s32 1, %s19
    $region7: #{tpu_custom_call.1} parent=1 // loop_footer_branch
      %18 = sbr.rel target = $region3
    $region8: #{tpu_custom_call.1} parent=1 // loop_exit
      _
    %541 = vsyncpa [#allocation4], 1
    %s542 = scalar_lea.sflag [#allocation4], 1
    %543 = vsyncpa %s542, 1
    %544 = vsyncpa [#allocation6], 1

</llo_original>
